<compile_context>
chip_gen: v6e
topology: v6e:2x2x1
jax: 0.10.0
libtpu: 0.0.40
codegen_flags: <defaults>
</compile_context>

<pallas_src>
import functools

import jax
import jax.numpy as jnp
from jax.experimental import pallas as pl
from jax.experimental.pallas import tpu as pltpu

# ----------------------------- model config ---------------------------------
NODE_IN = 8      # node_in_dim
EDGE_IN = 6      # edge_in_dim
HIDDEN = 16      # hidden_dim
NUM_CLASS = 4    # num_class
NUM_LAYERS = 2   # num_layers
# dropout=None in this instantiation -> dropout_layer is identity (never used).

# NodeFlow layer sizes (layer i+1 nodes are a prefix of layer i nodes, so the
# DGL map_from_parent_nid remap is simply arange(n_{i+1})).
LAYER_SIZES = (12, 8, 4)
EDGE_COUNTS = (20, 10)

LANE = 128
EIP = 8                                   # edge-feature columns padded 6 -> 8
_D_IN = [NODE_IN] + [HIDDEN] * (NUM_LAYERS - 1)        # [8, 16]
_DH = [d * HIDDEN for d in _D_IN]                      # [128, 256]
_WIDE_WIDTH = 2 * max(_DH)                             # 512


def _ceil8(x):
    return (x + 7) // 8 * 8


# ------------------------- static packing layout -----------------------------
def _build_layouts():
    small, wide = {}, {}
    srow, wrow = [0], [0]

    def add(table, counter, name, rows, cols, width):
        assert cols <= width, (name, cols, width)
        table[name] = (counter[0], rows, cols)
        counter[0] += _ceil8(rows)

    # wide blob (width 512): per-layer block-diagonal RHS pieces, edge biases, R
    add(wide, wrow, "B0", EIP + LAYER_SIZES[0], 2 * _DH[0], _WIDE_WIDTH)
    for i in range(1, NUM_LAYERS):
        add(wide, wrow, f"Btop{i}", EIP, 2 * _DH[i], _WIDE_WIDTH)
    for i in range(NUM_LAYERS):
        add(wide, wrow, f"eb{i}", 1, _DH[i], _WIDE_WIDTH)
    if NUM_LAYERS > 1:
        add(wide, wrow, "R", HIDDEN, HIDDEN * HIDDEN, _WIDE_WIDTH)

    # small blob (width 128): fused LHS, scatter one-hots, node/fc weights
    for i in range(NUM_LAYERS):
        add(small, srow, f"A{i}", EDGE_COUNTS[i], EIP + LAYER_SIZES[i], LANE)
        add(small, srow, f"dst{i}", LAYER_SIZES[i + 1], EDGE_COUNTS[i], LANE)
        add(small, srow, f"nw{i}", _D_IN[i], HIDDEN, LANE)
        add(small, srow, f"nb{i}", 1, HIDDEN, LANE)
    add(small, srow, "selfh0", LAYER_SIZES[1], NODE_IN, LANE)
    add(small, srow, "fw", HIDDEN, NUM_CLASS, LANE)
    add(small, srow, "fb", 1, NUM_CLASS, LANE)
    return small, srow[0], wide, wrow[0]


_SMALL_LAYOUT, _SMALL_ROWS, _WIDE_LAYOUT, _WIDE_ROWS = _build_layouts()


def _pack(layout, rows, width, arrays):
    blob = jnp.zeros((rows, width), jnp.float32)
    for name, arr in arrays.items():
        off, r, c = layout[name]
        blob = blob.at[off:off + r, 0:c].set(arr.astype(jnp.float32))
    return blob


# ------------------------------ fused kernel --------------------------------
def _fused_forward_kernel(small_ref, wide_ref, out_ref, *, small_layout, wide_layout):
    f32 = jnp.float32

    def rd(ref, layout, name):
        off, r, c = layout[name]
        return ref[off:off + r, 0:c]              # static VMEM window load

    def fold_bmm(e, hsr, dh):
        # m[:, hh] = sum_d e[:, d*H + hh] * hsr[:, d*H + hh]
        # one full-lane VPU multiply + log2(d_in) lane-fold adds (XLU shifts);
        # every fold boundary is a multiple of HIDDEN lanes by construction.
        t = e * hsr
        w = dh
        while w > HIDDEN:
            half = w // 2
            t = t[:, :half] + t[:, half:w]
            w = half
        return t                                   # [E, HIDDEN]

    h = None
    for i in range(NUM_LAYERS):                    # statically unrolled
        d_in, dh = _D_IN[i], _DH[i]
        n_src, n_dst = LAYER_SIZES[i], LAYER_SIZES[i + 1]

        a = rd(small_ref, small_layout, f"A{i}")   # [E, EIP + n_src]  (ef | onehot(src))
        if i == 0:
            # whole block-diagonal RHS (edge weights + replicated h0) is packed
            b = rd(wide_ref, wide_layout, "B0")                        # [EIP+n_src, 2*dh]
            self_h = rd(small_ref, small_layout, "selfh0")             # [n_dst, d_in]
        else:
            # lower-right block of the block-diagonal RHS: lane-replicated h
            r_mat = rd(wide_ref, wide_layout, "R")                     # [H, H*H]
            h_rep = jnp.dot(h, r_mat, preferred_element_type=f32)      # [n_src, dh]
            b_top = rd(wide_ref, wide_layout, f"Btop{i}")              # [EIP, 2*dh]
            b_bot = jnp.concatenate(
                [jnp.zeros((n_src, dh), f32), h_rep], axis=1)          # [n_src, 2*dh]
            b = jnp.concatenate([b_top, b_bot], axis=0)                # [EIP+n_src, 2*dh]
            self_h = h[:n_dst]

        # fused edge-linear + src-gather: one MXU push produces both bmm inputs
        ab = jnp.dot(a, b, preferred_element_type=f32)                 # [E, 2*dh]
        eb = rd(wide_ref, wide_layout, f"eb{i}")                       # [1, dh]
        e = jnp.maximum(ab[:, :dh] + eb, 0.0)                          # relu(edge_layer)
        hsr = ab[:, dh:2 * dh]                                         # h_src replicated

        m = fold_bmm(e, hsr, dh)                                       # [E, HIDDEN]

        # reduce_func: sum of incoming messages per destination node (MXU)
        dst_oh = rd(small_ref, small_layout, f"dst{i}")                # [n_dst, E]
        h_agg = jnp.dot(dst_oh, m, preferred_element_type=f32)         # [n_dst, H]

        # NodeUpdate: activation = h_agg + relu(self_h @ W + b)
        nw = rd(small_ref, small_layout, f"nw{i}")                     # [d_in, H]
        nb = rd(small_ref, small_layout, f"nb{i}")                     # [1, H]
        upd = jnp.dot(self_h, nw, preferred_element_type=f32) + nb
        h = h_agg + jnp.maximum(upd, 0.0)                              # [n_dst, H]

    fw = rd(small_ref, small_layout, "fw")
    fb = rd(small_ref, small_layout, "fb")
    out = jnp.dot(h, fw, preferred_element_type=f32) + fb
    out_ref[...] = out.astype(out_ref.dtype)                           # [n_last, C]


# ------------------------------ wrapper --------------------------------------
def _to_d_major(ew, eb, d_in):
    # edge_layer output column  h*d_in + d  ->  d*HIDDEN + h
    ew_dm = (ew.reshape(EDGE_IN, HIDDEN, d_in)
               .transpose(0, 2, 1)
               .reshape(EDGE_IN, d_in * HIDDEN))
    eb_dm = eb.reshape(HIDDEN, d_in).T.reshape(1, d_in * HIDDEN)
    return ew_dm, eb_dm


def _one_hot(idx, n):
    return jax.nn.one_hot(idx, n, dtype=jnp.float32)


@jax.jit
def forward(params, node_features, blocks):
    """Single fused pallas_call (2 packed VMEM operands) for the whole forward."""
    small_arrays, wide_arrays = {}, {}
    h0 = node_features.astype(jnp.float32)

    for i in range(NUM_LAYERS):
        src, dst, edge_feats = blocks[i]
        d_in, dh = _D_IN[i], _DH[i]
        n_src, n_dst = LAYER_SIZES[i], LAYER_SIZES[i + 1]
        ew, eb = params["edge"][i]
        ew_dm, eb_dm = _to_d_major(ew, eb, d_in)          # tiny, folded under jit
        nw, nb = params["node"][i]

        ef_pad = jnp.pad(edge_feats.astype(jnp.float32), ((0, 0), (0, EIP - EDGE_IN)))
        a = jnp.concatenate([ef_pad, _one_hot(src, n_src)], axis=1)    # [E, EIP+n_src]
        ew_pad = jnp.pad(ew_dm, ((0, EIP - EDGE_IN), (0, 0)))          # [EIP, dh]
        b_top = jnp.concatenate([ew_pad, jnp.zeros((EIP, dh), jnp.float32)], axis=1)

        small_arrays[f"A{i}"] = a
        small_arrays[f"dst{i}"] = _one_hot(dst, n_dst).T               # [n_dst, E]
        small_arrays[f"nw{i}"] = nw
        small_arrays[f"nb{i}"] = nb.reshape(1, HIDDEN)
        wide_arrays[f"eb{i}"] = eb_dm

        if i == 0:
            # layer-0 h is an input, so the full block-diagonal RHS is packed here
            h0_rep = jnp.repeat(h0, HIDDEN, axis=1)                    # [n_src, dh]
            b_bot = jnp.concatenate(
                [jnp.zeros((n_src, dh), jnp.float32), h0_rep], axis=1)
            wide_arrays["B0"] = jnp.concatenate([b_top, b_bot], axis=0)
            small_arrays["selfh0"] = h0[:n_dst]
        else:
            wide_arrays[f"Btop{i}"] = b_top                            # [EIP, 2*dh]

    if NUM_LAYERS > 1:
        # lane-replication matrix: (h @ R)[:, d*HIDDEN + hh] == h[:, d]
        wide_arrays["R"] = jnp.repeat(jnp.eye(HIDDEN, dtype=jnp.float32), HIDDEN, axis=1)

    fw, fb = params["fc"]
    small_arrays["fw"] = fw
    small_arrays["fb"] = fb.reshape(1, NUM_CLASS)

    small_blob = _pack(_SMALL_LAYOUT, _SMALL_ROWS, LANE, small_arrays)
    wide_blob = _pack(_WIDE_LAYOUT, _WIDE_ROWS, _WIDE_WIDTH, wide_arrays)

    kernel = functools.partial(_fused_forward_kernel,
                               small_layout=_SMALL_LAYOUT,
                               wide_layout=_WIDE_LAYOUT)
    # Gridless call, 2 packed full-array VMEM operands: one kernel launch,
    # two input DMAs, no pipelining machinery, no cross-call HBM round-trips.
    return pl.pallas_call(
        kernel,
        out_shape=jax.ShapeDtypeStruct((LAYER_SIZES[-1], NUM_CLASS), jnp.float32),
        in_specs=[pl.BlockSpec(memory_space=pltpu.MemorySpace.VMEM),
                  pl.BlockSpec(memory_space=pltpu.MemorySpace.VMEM)],
        out_specs=pl.BlockSpec(memory_space=pltpu.MemorySpace.VMEM),
    )(small_blob, wide_blob)
    # TODO(synk): if many NodeFlows are processed per step, stack their packed
    # blobs along a leading 'parallel' grid axis (engages v7x's 2nd TensorCore,
    # amortizes launch cost) and emit a lane-dense stacked logits output.


# ------------------------------ parameters ----------------------------------
def _linear_params(key, in_dim, out_dim):
    # PyTorch nn.Linear default init: U(-1/sqrt(in), 1/sqrt(in))
    kw, kb = jax.random.split(key)
    bound = 1.0 / jnp.sqrt(jnp.float32(in_dim))
    w = jax.random.uniform(kw, (in_dim, out_dim), jnp.float32, -bound, bound)
    b = jax.random.uniform(kb, (out_dim,), jnp.float32, -bound, bound)
    return w, b


def init_params(key):
    keys = jax.random.split(key, 2 * NUM_LAYERS + 1)
    params = {"edge": [], "node": []}
    in_dims = [NODE_IN] + [HIDDEN] * (NUM_LAYERS - 1)
    for i in range(NUM_LAYERS):
        params["edge"].append(_linear_params(keys[2 * i], EDGE_IN, HIDDEN * in_dims[i]))
        params["node"].append(_linear_params(keys[2 * i + 1], in_dims[i], HIDDEN))
    params["fc"] = _linear_params(keys[-1], HIDDEN, NUM_CLASS)
    return params


# ------------------------------- reference ----------------------------------
def forward_reference(params, node_features, blocks):
    """Pure-JAX reference mirroring the PyTorch semantics."""
    h = node_features
    for i in range(NUM_LAYERS):
        src, dst, edge_feats = blocks[i]
        n_dst = LAYER_SIZES[i + 1]
        ew, eb = params["edge"][i]
        e = jax.nn.relu(edge_feats @ ew + eb)
        d_in = h.shape[1]
        e3 = e.reshape(e.shape[0], HIDDEN, d_in)
        self_h = h[:n_dst]
        h_src = h[src]
        m = jnp.einsum("ehd,ed->eh", e3, h_src)                   # torch.bmm
        h_agg = jax.ops.segment_sum(m, dst, num_segments=n_dst)   # sum reduce
        nw, nb = params["node"][i]
        h = h_agg + jax.nn.relu(self_h @ nw + nb)
    fw, fb = params["fc"]
    return h @ fw + fb


# --------------------------------- main --------------------------------------
if __name__ == "__main__":
    key = jax.random.PRNGKey(0)
    k_par, k_feat, k_graph = jax.random.split(key, 3)

    params = init_params(k_par)

    # node features for NodeFlow layer 0
    node_features = jax.random.normal(k_feat, (LAYER_SIZES[0], NODE_IN), jnp.float32)

    # synthetic NodeFlow blocks: (src_local_ids, dst_local_ids, edge_feats)
    blocks = []
    gkeys = jax.random.split(k_graph, 3 * NUM_LAYERS)
    for i in range(NUM_LAYERS):
        n_src, n_dst = LAYER_SIZES[i], LAYER_SIZES[i + 1]
        n_edges = EDGE_COUNTS[i]
        ks, kd, ke = gkeys[3 * i], gkeys[3 * i + 1], gkeys[3 * i + 2]
        src = jax.random.randint(ks, (n_edges,), 0, n_src, jnp.int32)
        # guarantee every destination node receives at least one message
        dst_extra = jax.random.randint(kd, (n_edges - n_dst,), 0, n_dst, jnp.int32)
        dst = jnp.concatenate([jnp.arange(n_dst, dtype=jnp.int32), dst_extra])
        edge_feats = jax.random.normal(ke, (n_edges, EDGE_IN), jnp.float32)
        blocks.append((src, dst, edge_feats))

    out = jax.block_until_ready(forward(params, node_features, blocks))

    ref = forward_reference(params, node_features, blocks)
    assert out.shape == (LAYER_SIZES[-1], NUM_CLASS), out.shape
    assert jnp.allclose(out, ref, rtol=1e-3, atol=1e-3), (out, ref)

    print("KERNEL_OK")
</pallas_src>

<mosaic_0001>
module attributes {stable_mosaic.version = 11 : i64} {
  func.func @_fused_forward_kernel(%arg0: memref<128x128xf32, #tpu.memory_space<vmem>>, %arg1: memref<64x512xf32, #tpu.memory_space<vmem>>, %arg2: memref<4x4xf32, #tpu.memory_space<vmem>>) attributes {dimension_semantics = [], scalar_prefetch = 0 : i64, scratch_operands = 0 : i64, tpu.core_type = #tpu.core_type<tc>} {
    %c0 = arith.constant 0 : index
    %c0_0 = arith.constant 0 : index
    %0 = vector.load %arg0[%c0, %c0_0] : memref<128x128xf32, #tpu.memory_space<vmem>>, vector<20x20xf32>
    %c0_1 = arith.constant 0 : index
    %c0_2 = arith.constant 0 : index
    %1 = vector.load %arg1[%c0_1, %c0_2] : memref<64x512xf32, #tpu.memory_space<vmem>>, vector<20x256xf32>
    %c96 = arith.constant 96 : index
    %c0_3 = arith.constant 0 : index
    %2 = vector.load %arg0[%c96, %c0_3] : memref<128x128xf32, #tpu.memory_space<vmem>>, vector<8x8xf32>
    %cst = arith.constant dense<0.000000e+00> : vector<20x256xf32>
    %3 = tpu.matmul %0, %1, %cst {dimension_numbers = #tpu.dot_dimension_numbers<[1], [0], [0], [1], [0, 0, 1, 1], [], []>} : vector<20x20xf32>, vector<20x256xf32>, vector<20x256xf32> -> vector<20x256xf32>
    %c32 = arith.constant 32 : index
    %c0_4 = arith.constant 0 : index
    %4 = vector.load %arg1[%c32, %c0_4] : memref<64x512xf32, #tpu.memory_space<vmem>>, vector<1x128xf32>
    %5 = vector.extract_strided_slice %3 {offsets = [0, 0], sizes = [20, 128], strides = [1, 1]} : vector<20x256xf32> to vector<20x128xf32>
    %6 = vector.broadcast %4 : vector<1x128xf32> to vector<20x128xf32>
    %7 = arith.addf %5, %6 : vector<20x128xf32>
    %cst_5 = arith.constant 0.000000e+00 : f32
    %8 = vector.broadcast %cst_5 : f32 to vector<20x128xf32>
    %9 = arith.maximumf %7, %8 : vector<20x128xf32>
    %10 = vector.extract_strided_slice %3 {offsets = [0, 128], sizes = [20, 128], strides = [1, 1]} : vector<20x256xf32> to vector<20x128xf32>
    %11 = arith.mulf %9, %10 : vector<20x128xf32>
    %12 = vector.extract_strided_slice %11 {offsets = [0, 0], sizes = [20, 64], strides = [1, 1]} : vector<20x128xf32> to vector<20x64xf32>
    %13 = vector.extract_strided_slice %11 {offsets = [0, 64], sizes = [20, 64], strides = [1, 1]} : vector<20x128xf32> to vector<20x64xf32>
    %14 = arith.addf %12, %13 : vector<20x64xf32>
    %15 = vector.extract_strided_slice %14 {offsets = [0, 0], sizes = [20, 32], strides = [1, 1]} : vector<20x64xf32> to vector<20x32xf32>
    %16 = vector.extract_strided_slice %14 {offsets = [0, 32], sizes = [20, 32], strides = [1, 1]} : vector<20x64xf32> to vector<20x32xf32>
    %17 = arith.addf %15, %16 : vector<20x32xf32>
    %18 = vector.extract_strided_slice %17 {offsets = [0, 0], sizes = [20, 16], strides = [1, 1]} : vector<20x32xf32> to vector<20x16xf32>
    %19 = vector.extract_strided_slice %17 {offsets = [0, 16], sizes = [20, 16], strides = [1, 1]} : vector<20x32xf32> to vector<20x16xf32>
    %20 = arith.addf %18, %19 : vector<20x16xf32>
    %c24 = arith.constant 24 : index
    %c0_6 = arith.constant 0 : index
    %21 = vector.load %arg0[%c24, %c0_6] : memref<128x128xf32, #tpu.memory_space<vmem>>, vector<8x20xf32>
    %cst_7 = arith.constant dense<0.000000e+00> : vector<8x16xf32>
    %22 = tpu.matmul %21, %20, %cst_7 {dimension_numbers = #tpu.dot_dimension_numbers<[1], [0], [0], [1], [0, 0, 1, 1], [], []>} : vector<8x20xf32>, vector<20x16xf32>, vector<8x16xf32> -> vector<8x16xf32>
    %c32_8 = arith.constant 32 : index
    %c0_9 = arith.constant 0 : index
    %23 = vector.load %arg0[%c32_8, %c0_9] : memref<128x128xf32, #tpu.memory_space<vmem>>, vector<8x16xf32>
    %c40 = arith.constant 40 : index
    %c0_10 = arith.constant 0 : index
    %24 = vector.load %arg0[%c40, %c0_10] : memref<128x128xf32, #tpu.memory_space<vmem>>, vector<1x16xf32>
    %cst_11 = arith.constant dense<0.000000e+00> : vector<8x16xf32>
    %25 = tpu.matmul %2, %23, %cst_11 {dimension_numbers = #tpu.dot_dimension_numbers<[1], [0], [0], [1], [0, 0, 1, 1], [], []>} : vector<8x8xf32>, vector<8x16xf32>, vector<8x16xf32> -> vector<8x16xf32>
    %26 = vector.broadcast %24 : vector<1x16xf32> to vector<8x16xf32>
    %27 = arith.addf %25, %26 : vector<8x16xf32>
    %cst_12 = arith.constant 0.000000e+00 : f32
    %28 = vector.broadcast %cst_12 : f32 to vector<8x16xf32>
    %29 = arith.maximumf %27, %28 : vector<8x16xf32>
    %30 = arith.addf %22, %29 : vector<8x16xf32>
    %c48 = arith.constant 48 : index
    %c0_13 = arith.constant 0 : index
    %31 = vector.load %arg0[%c48, %c0_13] : memref<128x128xf32, #tpu.memory_space<vmem>>, vector<10x16xf32>
    %c48_14 = arith.constant 48 : index
    %c0_15 = arith.constant 0 : index
    %32 = vector.load %arg1[%c48_14, %c0_15] : memref<64x512xf32, #tpu.memory_space<vmem>>, vector<16x256xf32>
    %cst_16 = arith.constant dense<0.000000e+00> : vector<8x256xf32>
    %33 = tpu.matmul %30, %32, %cst_16 {dimension_numbers = #tpu.dot_dimension_numbers<[1], [0], [0], [1], [0, 0, 1, 1], [], []>} : vector<8x16xf32>, vector<16x256xf32>, vector<8x256xf32> -> vector<8x256xf32>
    %c24_17 = arith.constant 24 : index
    %c0_18 = arith.constant 0 : index
    %34 = vector.load %arg1[%c24_17, %c0_18] : memref<64x512xf32, #tpu.memory_space<vmem>>, vector<8x512xf32>
    %cst_19 = arith.constant 0.000000e+00 : f32
    %35 = vector.broadcast %cst_19 : f32 to vector<8x256xf32>
    %36 = tpu.concatenate %35, %33 in 1 : vector<8x256xf32>, vector<8x256xf32> -> vector<8x512xf32>
    %37 = tpu.concatenate %34, %36 in 0 : vector<8x512xf32>, vector<8x512xf32> -> vector<16x512xf32>
    %38 = vector.extract_strided_slice %30 {offsets = [0, 0], sizes = [4, 16], strides = [1, 1]} : vector<8x16xf32> to vector<4x16xf32>
    %cst_20 = arith.constant dense<0.000000e+00> : vector<10x512xf32>
    %39 = tpu.matmul %31, %37, %cst_20 {dimension_numbers = #tpu.dot_dimension_numbers<[1], [0], [0], [1], [0, 0, 1, 1], [], []>} : vector<10x16xf32>, vector<16x512xf32>, vector<10x512xf32> -> vector<10x512xf32>
    %c40_21 = arith.constant 40 : index
    %c0_22 = arith.constant 0 : index
    %40 = vector.load %arg1[%c40_21, %c0_22] : memref<64x512xf32, #tpu.memory_space<vmem>>, vector<1x256xf32>
    %41 = vector.extract_strided_slice %39 {offsets = [0, 0], sizes = [10, 256], strides = [1, 1]} : vector<10x512xf32> to vector<10x256xf32>
    %42 = vector.broadcast %40 : vector<1x256xf32> to vector<10x256xf32>
    %43 = arith.addf %41, %42 : vector<10x256xf32>
    %cst_23 = arith.constant 0.000000e+00 : f32
    %44 = vector.broadcast %cst_23 : f32 to vector<10x256xf32>
    %45 = arith.maximumf %43, %44 : vector<10x256xf32>
    %46 = vector.extract_strided_slice %39 {offsets = [0, 256], sizes = [10, 256], strides = [1, 1]} : vector<10x512xf32> to vector<10x256xf32>
    %47 = arith.mulf %45, %46 : vector<10x256xf32>
    %48 = vector.extract_strided_slice %47 {offsets = [0, 0], sizes = [10, 128], strides = [1, 1]} : vector<10x256xf32> to vector<10x128xf32>
    %49 = vector.extract_strided_slice %47 {offsets = [0, 128], sizes = [10, 128], strides = [1, 1]} : vector<10x256xf32> to vector<10x128xf32>
    %50 = arith.addf %48, %49 : vector<10x128xf32>
    %51 = vector.extract_strided_slice %50 {offsets = [0, 0], sizes = [10, 64], strides = [1, 1]} : vector<10x128xf32> to vector<10x64xf32>
    %52 = vector.extract_strided_slice %50 {offsets = [0, 64], sizes = [10, 64], strides = [1, 1]} : vector<10x128xf32> to vector<10x64xf32>
    %53 = arith.addf %51, %52 : vector<10x64xf32>
    %54 = vector.extract_strided_slice %53 {offsets = [0, 0], sizes = [10, 32], strides = [1, 1]} : vector<10x64xf32> to vector<10x32xf32>
    %55 = vector.extract_strided_slice %53 {offsets = [0, 32], sizes = [10, 32], strides = [1, 1]} : vector<10x64xf32> to vector<10x32xf32>
    %56 = arith.addf %54, %55 : vector<10x32xf32>
    %57 = vector.extract_strided_slice %56 {offsets = [0, 0], sizes = [10, 16], strides = [1, 1]} : vector<10x32xf32> to vector<10x16xf32>
    %58 = vector.extract_strided_slice %56 {offsets = [0, 16], sizes = [10, 16], strides = [1, 1]} : vector<10x32xf32> to vector<10x16xf32>
    %59 = arith.addf %57, %58 : vector<10x16xf32>
    %c64 = arith.constant 64 : index
    %c0_24 = arith.constant 0 : index
    %60 = vector.load %arg0[%c64, %c0_24] : memref<128x128xf32, #tpu.memory_space<vmem>>, vector<4x10xf32>
    %cst_25 = arith.constant dense<0.000000e+00> : vector<4x16xf32>
    %61 = tpu.matmul %60, %59, %cst_25 {dimension_numbers = #tpu.dot_dimension_numbers<[1], [0], [0], [1], [0, 0, 1, 1], [], []>} : vector<4x10xf32>, vector<10x16xf32>, vector<4x16xf32> -> vector<4x16xf32>
    %c72 = arith.constant 72 : index
    %c0_26 = arith.constant 0 : index
    %62 = vector.load %arg0[%c72, %c0_26] : memref<128x128xf32, #tpu.memory_space<vmem>>, vector<16x16xf32>
    %c88 = arith.constant 88 : index
    %c0_27 = arith.constant 0 : index
    %63 = vector.load %arg0[%c88, %c0_27] : memref<128x128xf32, #tpu.memory_space<vmem>>, vector<1x16xf32>
    %cst_28 = arith.constant dense<0.000000e+00> : vector<4x16xf32>
    %64 = tpu.matmul %38, %62, %cst_28 {dimension_numbers = #tpu.dot_dimension_numbers<[1], [0], [0], [1], [0, 0, 1, 1], [], []>} : vector<4x16xf32>, vector<16x16xf32>, vector<4x16xf32> -> vector<4x16xf32>
    %65 = vector.broadcast %63 : vector<1x16xf32> to vector<4x16xf32>
    %66 = arith.addf %64, %65 : vector<4x16xf32>
    %cst_29 = arith.constant 0.000000e+00 : f32
    %67 = vector.broadcast %cst_29 : f32 to vector<4x16xf32>
    %68 = arith.maximumf %66, %67 : vector<4x16xf32>
    %69 = arith.addf %61, %68 : vector<4x16xf32>
    %c104 = arith.constant 104 : index
    %c0_30 = arith.constant 0 : index
    %70 = vector.load %arg0[%c104, %c0_30] : memref<128x128xf32, #tpu.memory_space<vmem>>, vector<16x4xf32>
    %c120 = arith.constant 120 : index
    %c0_31 = arith.constant 0 : index
    %71 = vector.load %arg0[%c120, %c0_31] : memref<128x128xf32, #tpu.memory_space<vmem>>, vector<1x4xf32>
    %cst_32 = arith.constant dense<0.000000e+00> : vector<4x4xf32>
    %72 = tpu.matmul %69, %70, %cst_32 {dimension_numbers = #tpu.dot_dimension_numbers<[1], [0], [0], [1], [0, 0, 1, 1], [], []>} : vector<4x16xf32>, vector<16x4xf32>, vector<4x4xf32> -> vector<4x4xf32>
    %73 = vector.broadcast %71 : vector<1x4xf32> to vector<4x4xf32>
    %74 = arith.addf %72, %73 : vector<4x4xf32>
    %c0_33 = arith.constant 0 : index
    %c0_34 = arith.constant 0 : index
    %75 = vector.load %arg2[%c0_33, %c0_34] : memref<4x4xf32, #tpu.memory_space<vmem>>, vector<4x4xf32>
    tpu.vector_store %arg2[%c0_33, %c0_34], %74 {strides = array<i32>} : memref<4x4xf32, #tpu.memory_space<vmem>>, vector<4x4xf32>,
    return
  }
}

</mosaic_0001>

<llo_original>
// kernel: forward.1
$region0: #{forward.1}
  #allocation0 [shape = 'u32[]', space=smem, size = 0x4, offset = 0x4, fixed_abs, tag = 'smem constant byte address 0x4 - core index']
  #allocation1 [shape = 'u32[144,128]{1,0:T(1,128)}', space=vmem, size = 0x12000, scoped, tag = 'internal scratch']
  %s0 = inlined_call_operand.vmem [shape: f32[128,128], index: 0, kind: input, shape index: {}]
  %s1 = inlined_call_operand.vmem [shape: f32[64,512], index: 1, kind: input, shape index: {}]
  %s2 = inlined_call_operand.hbm [shape: f32[4,4], index: 2, kind: output, shape index: {}]
  %s3 = sld [smem:[#allocation0]]
  $region18: #{forward.1} parent=0
    _
  %s5 = ssub.s32 1, %s3
  %s6 = scalar_select 0, %s5, %s3
  $region1: #{forward.1} parent=0
    #allocation2 [shape = 'u8[2048]{0}', space=vmem, size = 0x800, scoped, tag = 'output window, operand 0, single buffered']
    #allocation3 [shape = 's32[1]{0}', space=sflag, size = 0x4, scoped, tag = 'scoped memory for forward.1']
    %7 = vsyncpa [#allocation3], 0
    // Predicated region
    $region2: #{forward.1} parent=1 // pred_check
      _
    $region3: #{forward.1} parent=1 // pred_check_branch
      %9 = sbr.rel (0) target = $region5
    $region4: #{forward.1} parent=1 // pred_region
      _
    $region5: #{forward.1} parent=1 // pred_fallthru
      _
    // Predicated region
    $region6: #{forward.1} parent=1 // pred_check
      _
    $region7: #{forward.1} parent=1 // pred_check_branch
      %11 = sbr.rel (0) target = $region9
    $region8: #{forward.1} parent=1 // pred_region
      _
    $region9: #{forward.1} parent=1 // pred_fallthru
      _
    %v12 = vld [vmem:[%s0] sm:$0xff]
    %v13 = vld [vmem:[%s0 + $0x8] sm:$0xff]
    %v14 = vld [vmem:[%s0 + $0x10] sm:$0xf]
    %v15 = vld [vmem:[%s1] sm:$0xff]
    %v16 = vld [vmem:[%s1 + $0x8] sm:$0xff]
    %v17 = vld [vmem:[%s1 + $0x20] sm:$0xff]
    %v18 = vld [vmem:[%s1 + $0x28] sm:$0xff]
    %v19 = vld [vmem:[%s1 + $0x40] sm:$0xf]
    %v20 = vld [vmem:[%s1 + $0x48] sm:$0xf]
    %v21 = vld [vmem:[%s0 + $0x60] sm:$0xff]
    %vm22 = vcmask 162816
    %v24 = vsel %vm22, %v12, 0
    %v27 = vsel %vm22, %v13, 0
    %v30 = vsel %vm22, %v14, 0
    %vm32 = vcmask 1043456
    %v34 = vsel %vm32, %v19, 0
    %v37 = vsel %vm32, %v20, 0
    %39 = vmatprep.subr.mxu0 0.0
    %40 = vmatpush1.msra.mxu0 0.0
    %41 = vmatprep.subr.mxu0 0.0
    %42 = vmatpush1.msra.mxu0 0.0
    %43 = vmatprep.subr.mxu0 0.0
    %44 = vmatpush1.msra.mxu0 0.0
    %45 = vmatprep.subr.mxu0 0.0
    %46 = vmatpush1.msra.mxu0 0.0
    %47 = vmatprep.subr.mxu0 0.0
    %48 = vmatpush1.msra.mxu0 0.0
    %49 = vmatprep.subr.mxu0 0.0
    %50 = vmatpush1.msra.mxu0 0.0
    %51 = vmatprep.subr.mxu0 0.0
    %52 = vmatpush1.msra.mxu0 0.0
    %53 = vmatprep.subr.mxu0 0.0
    %54 = vmatpush1.msra.mxu0 0.0
    %55 = vmatprep.subr.mxu0 0.0
    %56 = vmatpush1.msra.mxu0 0.0
    %57 = vmatprep.subr.mxu0 0.0
    %58 = vmatpush1.msra.mxu0 0.0
    %59 = vmatprep.subr.mxu0 0.0
    %60 = vmatpush1.msra.mxu0 0.0
    %61 = vmatprep.subr.mxu0 0.0
    %62 = vmatpush1.msra.mxu0 0.0
    %63 = vmatprep.subr.mxu0 0.0
    %64 = vmatpush1.msra.mxu0 0.0
    %65 = vmatprep.subr.mxu0 %v37
    %66 = vmatpush1.msra.mxu0 %v34
    %67 = vmatprep.subr.mxu0 %v18
    %68 = vmatpush1.msra.mxu0 %v17
    %69 = vmatprep.subr.mxu0 %v16
    %70 = vmatpush1.msra.mxu0 %v15
    %71 = vmatprep.subr.mxu0 0.0
    %72 = vmatpush2.msra.mxu0 0.0
    %73 = vmatprep.subr.mxu0 0.0
    %74 = vmatpush2.msra.mxu0 0.0
    %75 = vmatprep.subr.mxu0 0.0
    %76 = vmatpush2.msra.mxu0 0.0
    %77 = vmatprep.subr.mxu0 0.0
    %78 = vmatpush2.msra.mxu0 0.0
    %79 = vmatprep.subr.mxu0 0.0
    %80 = vmatpush2.msra.mxu0 0.0
    %81 = vmatprep.subr.mxu0 0.0
    %82 = vmatpush2.msra.mxu0 0.0
    %83 = vmatprep.subr.mxu0 0.0
    %84 = vmatpush2.msra.mxu0 0.0
    %85 = vmatprep.subr.mxu0 0.0
    %86 = vmatpush2.msra.mxu0 0.0
    %87 = vmatprep.subr.mxu0 0.0
    %88 = vmatpush2.msra.mxu0 0.0
    %89 = vmatprep.subr.mxu0 0.0
    %90 = vmatpush2.msra.mxu0 0.0
    %91 = vmatprep.subr.mxu0 0.0
    %92 = vmatpush2.msra.mxu0 0.0
    %93 = vmatprep.subr.mxu0 0.0
    %94 = vmatpush2.msra.mxu0 0.0
    %95 = vmatprep.subr.mxu0 0.0
    %96 = vmatpush2.msra.mxu0 0.0
    %97 = vmatprep.subr.mxu0 0.0
    %98 = vmatpush2.msra.mxu0 0.0
    %99 = vmatprep.subr.mxu0 0.0
    %100 = vmatpush2.msra.mxu0 0.0
    %101 = vmatprep.subr.mxu0 0.0
    %102 = vmatpush2.msra.mxu0 0.0
    %103 = vmatprep.mubr.f32.mxu0 0.0
    %104 = vmatmul.mubr.f32.gmra.mxu0 %v24
    %v105 = vpop.f32.mrf.mxu0
    %v106 = vadd.f32 0.0, %v105
    %v107 = vpop.f32.mrf.mxu0
    %v108 = vadd.f32 0.0, %v107
    %109 = vmatprep.mubr.f32.mxu0 0.0
    %110 = vmatmul.mubr.f32.gmra.mxu0 %v27
    %v111 = vpop.f32.mrf.mxu0
    %v112 = vadd.f32 0.0, %v111
    %v113 = vpop.f32.mrf.mxu0
    %v114 = vadd.f32 0.0, %v113
    %115 = vmatprep.mubr.f32.mxu0 0.0
    %116 = vmatmul.mubr.f32.gmra.mxu0 %v30
    %v117 = vpop.f32.mrf.mxu0
    %v118 = vadd.f32 0.0, %v117
    %v119 = vpop.f32.mrf.mxu0
    %v120 = vadd.f32 0.0, %v119
    %121 = vdwg.mxu0
    %v122 = vld [vmem:[%s1 + $0x80] ss:$0 sm:$0xff]
    %v123 = vadd.f32 %v106, %v122
    %v124 = vadd.f32 %v112, %v122
    %v125 = vadd.f32 %v118, %v122
    %v126 = vmax.f32 %v123, 0.0
    %v127 = vmax.f32 %v124, 0.0
    %v128 = vmax.f32 %v125, 0.0
    %v129 = vmul.f32 %v126, %v108
    %v130 = vmul.f32 %v127, %v114
    %v131 = vmul.f32 %v128, %v120
    %135 = vrot.lane.b32.xlu0 %v129, 64
    %v136 = vpop.permute.xlu0 %135
    %137 = vrot.lane.b32.xlu0 %v130, 64
    %v138 = vpop.permute.xlu0 %137
    %139 = vrot.lane.b32.xlu0 %v131, 64
    %v140 = vpop.permute.xlu0 %139
    %v144 = vadd.f32 %v129, %v136
    %v145 = vadd.f32 %v130, %v138
    %v146 = vadd.f32 %v131, %v140
    %150 = vrot.lane.b32.xlu0 %v144, 96
    %v151 = vpop.permute.xlu0 %150
    %152 = vrot.lane.b32.xlu0 %v145, 96
    %v153 = vpop.permute.xlu0 %152
    %154 = vrot.lane.b32.xlu0 %v146, 96
    %v155 = vpop.permute.xlu0 %154
    %v159 = vadd.f32 %v144, %v151
    %v160 = vadd.f32 %v145, %v153
    %v161 = vadd.f32 %v146, %v155
    %165 = vrot.lane.b32.xlu0 %v159, 112
    %v166 = vpop.permute.xlu0 %165
    %167 = vrot.lane.b32.xlu0 %v160, 112
    %v168 = vpop.permute.xlu0 %167
    %169 = vrot.lane.b32.xlu0 %v161, 112
    %v170 = vpop.permute.xlu0 %169
    %v174 = vadd.f32 %v159, %v166
    %v175 = vadd.f32 %v160, %v168
    %v176 = vadd.f32 %v161, %v170
    %v177 = vld [vmem:[%s0 + $0x18] sm:$0xff]
    %v178 = vld [vmem:[%s0 + $0x20] sm:$0xff]
    %v179 = vld [vmem:[%s0 + $0x28] sm:$0x1]
    %v180 = vlaneseq
    %v181 = vshrl.u32 %v180, 7
    %v182 = vsub.s32 0, %v181
    %v183 = vrot.slane %v179, %v182
    %vm184 = vcmask 64512
    %v186 = vsel %vm184, %v21, 0
    %188 = vmatprep.subr.mxu0 0.0
    %189 = vmatpush1.msra.mxu0 0.0
    %190 = vmatprep.subr.mxu0 0.0
    %191 = vmatpush1.msra.mxu0 0.0
    %192 = vmatprep.subr.mxu0 0.0
    %193 = vmatpush1.msra.mxu0 0.0
    %194 = vmatprep.subr.mxu0 0.0
    %195 = vmatpush1.msra.mxu0 0.0
    %196 = vmatprep.subr.mxu0 0.0
    %197 = vmatpush1.msra.mxu0 0.0
    %198 = vmatprep.subr.mxu0 0.0
    %199 = vmatpush1.msra.mxu0 0.0
    %200 = vmatprep.subr.mxu0 0.0
    %201 = vmatpush1.msra.mxu0 0.0
    %202 = vmatprep.subr.mxu0 0.0
    %203 = vmatpush1.msra.mxu0 0.0
    %204 = vmatprep.subr.mxu0 0.0
    %205 = vmatpush1.msra.mxu0 0.0
    %206 = vmatprep.subr.mxu0 0.0
    %207 = vmatpush1.msra.mxu0 0.0
    %208 = vmatprep.subr.mxu0 0.0
    %209 = vmatpush1.msra.mxu0 0.0
    %210 = vmatprep.subr.mxu0 0.0
    %211 = vmatpush1.msra.mxu0 0.0
    %212 = vmatprep.subr.mxu0 0.0
    %213 = vmatpush1.msra.mxu0 0.0
    %214 = vmatprep.subr.mxu0 0.0
    %215 = vmatpush1.msra.mxu0 0.0
    %216 = vmatprep.subr.mxu0 0.0
    %217 = vmatpush1.msra.mxu0 0.0
    %218 = vmatprep.subr.mxu0 0.0
    %219 = vmatpush1.msra.mxu0 %v178
    %220 = vmatprep.subr.mxu0 0.0
    %221 = vmatpush2.msra.mxu0 0.0
    %222 = vmatprep.subr.mxu0 0.0
    %223 = vmatpush2.msra.mxu0 0.0
    %224 = vmatprep.subr.mxu0 0.0
    %225 = vmatpush2.msra.mxu0 0.0
    %226 = vmatprep.subr.mxu0 0.0
    %227 = vmatpush2.msra.mxu0 0.0
    %228 = vmatprep.subr.mxu0 0.0
    %229 = vmatpush2.msra.mxu0 0.0
    %230 = vmatprep.subr.mxu0 0.0
    %231 = vmatpush2.msra.mxu0 0.0
    %232 = vmatprep.subr.mxu0 0.0
    %233 = vmatpush2.msra.mxu0 0.0
    %234 = vmatprep.subr.mxu0 0.0
    %235 = vmatpush2.msra.mxu0 0.0
    %236 = vmatprep.subr.mxu0 0.0
    %237 = vmatpush2.msra.mxu0 0.0
    %238 = vmatprep.subr.mxu0 0.0
    %239 = vmatpush2.msra.mxu0 0.0
    %240 = vmatprep.subr.mxu0 0.0
    %241 = vmatpush2.msra.mxu0 0.0
    %242 = vmatprep.subr.mxu0 0.0
    %243 = vmatpush2.msra.mxu0 0.0
    %244 = vmatprep.subr.mxu0 0.0
    %245 = vmatpush2.msra.mxu0 0.0
    %246 = vmatprep.subr.mxu0 0.0
    %247 = vmatpush2.msra.mxu0 0.0
    %248 = vmatprep.subr.mxu0 0.0
    %249 = vmatpush2.msra.mxu0 0.0
    %250 = vmatprep.subr.mxu0 0.0
    %251 = vmatpush2.msra.mxu0 0.0
    %252 = vmatprep.mubr.f32.mxu0 0.0
    %253 = vmatmul.mubr.f32.gmra.mxu0 %v186
    %v254 = vpop.f32.mrf.mxu0
    %v255 = vadd.f32 %v183, %v254
    %v256 = vpop.f32.mrf.mxu0
    %257 = vdwg.mxu0
    %v258 = vmax.f32 %v255, 0.0
    %v260 = vsel %vm22, %v177, 0
    %v263 = vsel %vm32, %v176, 0
    %265 = vmatprep.subr.mxu0 0.0
    %266 = vmatpush1.msra.mxu0 0.0
    %267 = vmatprep.subr.mxu0 0.0
    %268 = vmatpush1.msra.mxu0 0.0
    %269 = vmatprep.subr.mxu0 0.0
    %270 = vmatpush1.msra.mxu0 0.0
    %271 = vmatprep.subr.mxu0 0.0
    %272 = vmatpush1.msra.mxu0 0.0
    %273 = vmatprep.subr.mxu0 0.0
    %274 = vmatpush1.msra.mxu0 0.0
    %275 = vmatprep.subr.mxu0 0.0
    %276 = vmatpush1.msra.mxu0 0.0
    %277 = vmatprep.subr.mxu0 0.0
    %278 = vmatpush1.msra.mxu0 0.0
    %279 = vmatprep.subr.mxu0 0.0
    %280 = vmatpush1.msra.mxu0 0.0
    %281 = vmatprep.subr.mxu0 0.0
    %282 = vmatpush1.msra.mxu0 0.0
    %283 = vmatprep.subr.mxu0 0.0
    %284 = vmatpush1.msra.mxu0 0.0
    %285 = vmatprep.subr.mxu0 0.0
    %286 = vmatpush1.msra.mxu0 0.0
    %287 = vmatprep.subr.mxu0 0.0
    %288 = vmatpush1.msra.mxu0 0.0
    %289 = vmatprep.subr.mxu0 0.0
    %290 = vmatpush1.msra.mxu0 0.0
    %291 = vmatprep.subr.mxu0 0.0
    %292 = vmatpush1.msra.mxu0 %v263
    %293 = vmatprep.subr.mxu0 0.0
    %294 = vmatpush1.msra.mxu0 %v175
    %295 = vmatprep.subr.mxu0 0.0
    %296 = vmatpush1.msra.mxu0 %v174
    %297 = vmatprep.subr.mxu0 0.0
    %298 = vmatpush2.msra.mxu0 0.0
    %299 = vmatprep.subr.mxu0 0.0
    %300 = vmatpush2.msra.mxu0 0.0
    %301 = vmatprep.subr.mxu0 0.0
    %302 = vmatpush2.msra.mxu0 0.0
    %303 = vmatprep.subr.mxu0 0.0
    %304 = vmatpush2.msra.mxu0 0.0
    %305 = vmatprep.subr.mxu0 0.0
    %306 = vmatpush2.msra.mxu0 0.0
    %307 = vmatprep.subr.mxu0 0.0
    %308 = vmatpush2.msra.mxu0 0.0
    %309 = vmatprep.subr.mxu0 0.0
    %310 = vmatpush2.msra.mxu0 0.0
    %311 = vmatprep.subr.mxu0 0.0
    %312 = vmatpush2.msra.mxu0 0.0
    %313 = vmatprep.subr.mxu0 0.0
    %314 = vmatpush2.msra.mxu0 0.0
    %315 = vmatprep.subr.mxu0 0.0
    %316 = vmatpush2.msra.mxu0 0.0
    %317 = vmatprep.subr.mxu0 0.0
    %318 = vmatpush2.msra.mxu0 0.0
    %319 = vmatprep.subr.mxu0 0.0
    %320 = vmatpush2.msra.mxu0 0.0
    %321 = vmatprep.subr.mxu0 0.0
    %322 = vmatpush2.msra.mxu0 0.0
    %323 = vmatprep.subr.mxu0 0.0
    %324 = vmatpush2.msra.mxu0 0.0
    %325 = vmatprep.subr.mxu0 0.0
    %326 = vmatpush2.msra.mxu0 0.0
    %327 = vmatprep.subr.mxu0 0.0
    %328 = vmatpush2.msra.mxu0 0.0
    %329 = vmatprep.mubr.f32.mxu0 0.0
    %330 = vmatmul.mubr.f32.gmra.mxu0 %v260
    %v331 = vpop.f32.mrf.mxu0
    %v332 = vadd.f32 %v258, %v331
    %v333 = vpop.f32.mrf.mxu0
    %334 = vdwg.mxu0
    %v335 = vld [vmem:[%s0 + $0x30] sm:$0xff]
    %v336 = vld [vmem:[%s0 + $0x38] sm:$0x3]
    %v337 = vld [vmem:[%s1 + $0xc0] sm:$0xff]
    %v338 = vld [vmem:[%s1 + $0xc8] sm:$0xff]
    %v339 = vld [vmem:[%s1 + $0xe0] sm:$0xff]
    %v340 = vld [vmem:[%s1 + $0xe8] sm:$0xff]
    %vm341 = vcmask 130048
    %v343 = vsel %vm341, %v332, 0
    %345 = vmatprep.subr.mxu0 0.0
    %346 = vmatpush1.msra.mxu0 0.0
    %347 = vmatprep.subr.mxu0 0.0
    %348 = vmatpush1.msra.mxu0 0.0
    %349 = vmatprep.subr.mxu0 0.0
    %350 = vmatpush1.msra.mxu0 0.0
    %351 = vmatprep.subr.mxu0 0.0
    %352 = vmatpush1.msra.mxu0 0.0
    %353 = vmatprep.subr.mxu0 0.0
    %354 = vmatpush1.msra.mxu0 0.0
    %355 = vmatprep.subr.mxu0 0.0
    %356 = vmatpush1.msra.mxu0 0.0
    %357 = vmatprep.subr.mxu0 0.0
    %358 = vmatpush1.msra.mxu0 0.0
    %359 = vmatprep.subr.mxu0 0.0
    %360 = vmatpush1.msra.mxu0 0.0
    %361 = vmatprep.subr.mxu0 0.0
    %362 = vmatpush1.msra.mxu0 0.0
    %363 = vmatprep.subr.mxu0 0.0
    %364 = vmatpush1.msra.mxu0 0.0
    %365 = vmatprep.subr.mxu0 0.0
    %366 = vmatpush1.msra.mxu0 0.0
    %367 = vmatprep.subr.mxu0 0.0
    %368 = vmatpush1.msra.mxu0 0.0
    %369 = vmatprep.subr.mxu0 0.0
    %370 = vmatpush1.msra.mxu0 0.0
    %371 = vmatprep.subr.mxu0 0.0
    %372 = vmatpush1.msra.mxu0 0.0
    %373 = vmatprep.subr.mxu0 %v340
    %374 = vmatpush1.msra.mxu0 %v339
    %375 = vmatprep.subr.mxu0 %v338
    %376 = vmatpush1.msra.mxu0 %v337
    %377 = vmatprep.subr.mxu0 0.0
    %378 = vmatpush2.msra.mxu0 0.0
    %379 = vmatprep.subr.mxu0 0.0
    %380 = vmatpush2.msra.mxu0 0.0
    %381 = vmatprep.subr.mxu0 0.0
    %382 = vmatpush2.msra.mxu0 0.0
    %383 = vmatprep.subr.mxu0 0.0
    %384 = vmatpush2.msra.mxu0 0.0
    %385 = vmatprep.subr.mxu0 0.0
    %386 = vmatpush2.msra.mxu0 0.0
    %387 = vmatprep.subr.mxu0 0.0
    %388 = vmatpush2.msra.mxu0 0.0
    %389 = vmatprep.subr.mxu0 0.0
    %390 = vmatpush2.msra.mxu0 0.0
    %391 = vmatprep.subr.mxu0 0.0
    %392 = vmatpush2.msra.mxu0 0.0
    %393 = vmatprep.subr.mxu0 0.0
    %394 = vmatpush2.msra.mxu0 0.0
    %395 = vmatprep.subr.mxu0 0.0
    %396 = vmatpush2.msra.mxu0 0.0
    %397 = vmatprep.subr.mxu0 0.0
    %398 = vmatpush2.msra.mxu0 0.0
    %399 = vmatprep.subr.mxu0 0.0
    %400 = vmatpush2.msra.mxu0 0.0
    %401 = vmatprep.subr.mxu0 0.0
    %402 = vmatpush2.msra.mxu0 0.0
    %403 = vmatprep.subr.mxu0 0.0
    %404 = vmatpush2.msra.mxu0 0.0
    %405 = vmatprep.subr.mxu0 0.0
    %406 = vmatpush2.msra.mxu0 0.0
    %407 = vmatprep.subr.mxu0 0.0
    %408 = vmatpush2.msra.mxu0 0.0
    %409 = vmatprep.mubr.f32.mxu0 0.0
    %410 = vmatmul.mubr.f32.gmra.mxu0 %v343
    %v411 = vpop.f32.mrf.mxu0
    %v412 = vadd.f32 0.0, %v411
    %v413 = vpop.f32.mrf.mxu0
    %v414 = vadd.f32 0.0, %v413
    %415 = vdwg.mxu0
    %v416 = vld [vmem:[%s1 + $0x60] sm:$0xff]
    %v417 = vld [vmem:[%s1 + $0x68] sm:$0xff]
    %v418 = vld [vmem:[%s1 + $0x70] sm:$0xff]
    %v419 = vld [vmem:[%s1 + $0x78] sm:$0xff]
    %v421 = vsel %vm341, %v335, 0
    %v424 = vsel %vm341, %v336, 0
    %426 = vmatprep.subr.mxu0 0.0
    %427 = vmatpush1.msra.mxu0 0.0
    %428 = vmatprep.subr.mxu0 0.0
    %429 = vmatpush1.msra.mxu0 0.0
    %430 = vmatprep.subr.mxu0 0.0
    %431 = vmatpush1.msra.mxu0 0.0
    %432 = vmatprep.subr.mxu0 0.0
    %433 = vmatpush1.msra.mxu0 0.0
    %434 = vmatprep.subr.mxu0 0.0
    %435 = vmatpush1.msra.mxu0 0.0
    %436 = vmatprep.subr.mxu0 0.0
    %437 = vmatpush1.msra.mxu0 0.0
    %438 = vmatprep.subr.mxu0 0.0
    %439 = vmatpush1.msra.mxu0 0.0
    %440 = vmatprep.subr.mxu0 0.0
    %441 = vmatpush1.msra.mxu0 0.0
    %442 = vmatprep.subr.mxu0 0.0
    %443 = vmatpush1.msra.mxu0 0.0
    %444 = vmatprep.subr.mxu0 0.0
    %445 = vmatpush1.msra.mxu0 0.0
    %446 = vmatprep.subr.mxu0 0.0
    %447 = vmatpush1.msra.mxu0 0.0
    %448 = vmatprep.subr.mxu0 0.0
    %449 = vmatpush1.msra.mxu0 0.0
    %450 = vmatprep.subr.mxu0 0.0
    %451 = vmatpush1.msra.mxu0 0.0
    %452 = vmatprep.subr.mxu0 0.0
    %453 = vmatpush1.msra.mxu0 0.0
    %454 = vmatprep.subr.mxu0 0.0
    %455 = vmatpush1.msra.mxu0 0.0
    %456 = vmatprep.subr.mxu0 %v417
    %457 = vmatpush1.msra.mxu0 %v416
    %458 = vmatprep.subr.mxu0 0.0
    %459 = vmatpush2.msra.mxu0 0.0
    %460 = vmatprep.subr.mxu0 0.0
    %461 = vmatpush2.msra.mxu0 0.0
    %462 = vmatprep.subr.mxu0 0.0
    %463 = vmatpush2.msra.mxu0 0.0
    %464 = vmatprep.subr.mxu0 0.0
    %465 = vmatpush2.msra.mxu0 0.0
    %466 = vmatprep.subr.mxu0 0.0
    %467 = vmatpush2.msra.mxu0 0.0
    %468 = vmatprep.subr.mxu0 0.0
    %469 = vmatpush2.msra.mxu0 0.0
    %470 = vmatprep.subr.mxu0 0.0
    %471 = vmatpush2.msra.mxu0 0.0
    %472 = vmatprep.subr.mxu0 0.0
    %473 = vmatpush2.msra.mxu0 0.0
    %474 = vmatprep.subr.mxu0 0.0
    %475 = vmatpush2.msra.mxu0 0.0
    %476 = vmatprep.subr.mxu0 0.0
    %477 = vmatpush2.msra.mxu0 0.0
    %478 = vmatprep.subr.mxu0 0.0
    %479 = vmatpush2.msra.mxu0 0.0
    %480 = vmatprep.subr.mxu0 0.0
    %481 = vmatpush2.msra.mxu0 0.0
    %482 = vmatprep.subr.mxu0 0.0
    %483 = vmatpush2.msra.mxu0 0.0
    %484 = vmatprep.subr.mxu0 0.0
    %485 = vmatpush2.msra.mxu0 0.0
    %486 = vmatprep.subr.mxu0 0.0
    %487 = vmatpush2.msra.mxu0 0.0
    %488 = vmatprep.subr.mxu0 0.0
    %489 = vmatpush2.msra.mxu0 0.0
    %490 = vmatprep.mubr.f32.mxu0 0.0
    %491 = vmatmul.mubr.f32.gmra.mxu0 %v421
    %v492 = vpop.f32.mrf.mxu0
    %v493 = vadd.f32 0.0, %v492
    %v494 = vpop.f32.mrf.mxu0
    %v495 = vadd.f32 0.0, %v494
    %496 = vmatprep.mubr.f32.mxu0 0.0
    %497 = vmatmul.mubr.f32.gmra.mxu0 %v424
    %v498 = vpop.f32.mrf.mxu0
    %v499 = vadd.f32 0.0, %v498
    %v500 = vpop.f32.mrf.mxu0
    %v501 = vadd.f32 0.0, %v500
    %502 = vdwg.mxu0
    %503 = vmatprep.subr.mxu0 0.0
    %504 = vmatpush1.msra.mxu0 0.0
    %505 = vmatprep.subr.mxu0 0.0
    %506 = vmatpush1.msra.mxu0 0.0
    %507 = vmatprep.subr.mxu0 0.0
    %508 = vmatpush1.msra.mxu0 0.0
    %509 = vmatprep.subr.mxu0 0.0
    %510 = vmatpush1.msra.mxu0 0.0
    %511 = vmatprep.subr.mxu0 0.0
    %512 = vmatpush1.msra.mxu0 0.0
    %513 = vmatprep.subr.mxu0 0.0
    %514 = vmatpush1.msra.mxu0 0.0
    %515 = vmatprep.subr.mxu0 0.0
    %516 = vmatpush1.msra.mxu0 0.0
    %517 = vmatprep.subr.mxu0 0.0
    %518 = vmatpush1.msra.mxu0 0.0
    %519 = vmatprep.subr.mxu0 0.0
    %520 = vmatpush1.msra.mxu0 0.0
    %521 = vmatprep.subr.mxu0 0.0
    %522 = vmatpush1.msra.mxu0 0.0
    %523 = vmatprep.subr.mxu0 0.0
    %524 = vmatpush1.msra.mxu0 0.0
    %525 = vmatprep.subr.mxu0 0.0
    %526 = vmatpush1.msra.mxu0 0.0
    %527 = vmatprep.subr.mxu0 0.0
    %528 = vmatpush1.msra.mxu0 0.0
    %529 = vmatprep.subr.mxu0 0.0
    %530 = vmatpush1.msra.mxu0 0.0
    %531 = vmatprep.subr.mxu0 %v414
    %532 = vmatpush1.msra.mxu0 %v412
    %533 = vmatprep.subr.mxu0 %v419
    %534 = vmatpush1.msra.mxu0 %v418
    %535 = vmatprep.subr.mxu0 0.0
    %536 = vmatpush2.msra.mxu0 0.0
    %537 = vmatprep.subr.mxu0 0.0
    %538 = vmatpush2.msra.mxu0 0.0
    %539 = vmatprep.subr.mxu0 0.0
    %540 = vmatpush2.msra.mxu0 0.0
    %541 = vmatprep.subr.mxu0 0.0
    %542 = vmatpush2.msra.mxu0 0.0
    %543 = vmatprep.subr.mxu0 0.0
    %544 = vmatpush2.msra.mxu0 0.0
    %545 = vmatprep.subr.mxu0 0.0
    %546 = vmatpush2.msra.mxu0 0.0
    %547 = vmatprep.subr.mxu0 0.0
    %548 = vmatpush2.msra.mxu0 0.0
    %549 = vmatprep.subr.mxu0 0.0
    %550 = vmatpush2.msra.mxu0 0.0
    %551 = vmatprep.subr.mxu0 0.0
    %552 = vmatpush2.msra.mxu0 0.0
    %553 = vmatprep.subr.mxu0 0.0
    %554 = vmatpush2.msra.mxu0 0.0
    %555 = vmatprep.subr.mxu0 0.0
    %556 = vmatpush2.msra.mxu0 0.0
    %557 = vmatprep.subr.mxu0 0.0
    %558 = vmatpush2.msra.mxu0 0.0
    %559 = vmatprep.subr.mxu0 0.0
    %560 = vmatpush2.msra.mxu0 0.0
    %561 = vmatprep.subr.mxu0 0.0
    %562 = vmatpush2.msra.mxu0 0.0
    %563 = vmatprep.subr.mxu0 0.0
    %564 = vmatpush2.msra.mxu0 0.0
    %565 = vmatprep.subr.mxu0 0.0
    %566 = vmatpush2.msra.mxu0 0.0
    %567 = vmatprep.mubr.f32.mxu0 0.0
    %568 = vmatmul.mubr.f32.gmra.mxu0 %v421
    %v569 = vpop.f32.mrf.mxu0
    %v570 = vadd.f32 0.0, %v569
    %v571 = vpop.f32.mrf.mxu0
    %v572 = vadd.f32 0.0, %v571
    %573 = vmatprep.mubr.f32.mxu0 0.0
    %574 = vmatmul.mubr.f32.gmra.mxu0 %v424
    %v575 = vpop.f32.mrf.mxu0
    %v576 = vadd.f32 0.0, %v575
    %v577 = vpop.f32.mrf.mxu0
    %v578 = vadd.f32 0.0, %v577
    %579 = vdwg.mxu0
    %s580 = scalar_lea.vmem %s1, 160
    %v581 = vld [vmem:[%s580] ss:$8 sm:$0x3]
    %v583 = vlaneseq
    %v584 = vshrl.u32 %v583, 7
    %v585 = vsub.s32 0, %v584
    %v586 = vrot.slane %v581, %v585
    %v587 = vlaneseq
    %v588 = vshrl.u32 %v587, 7
    %v589 = vsub.s32 1, %v588
    %v590 = vrot.slane %v581, %v589
    %v593 = vadd.f32 %v493, %v586
    %v594 = vadd.f32 %v495, %v590
    %v595 = vadd.f32 %v499, %v586
    %v596 = vadd.f32 %v501, %v590
    %v597 = vmax.f32 %v593, 0.0
    %v598 = vmax.f32 %v594, 0.0
    %v599 = vmax.f32 %v595, 0.0
    %v600 = vmax.f32 %v596, 0.0
    %v601 = vmul.f32 %v597, %v570
    %v602 = vmul.f32 %v598, %v572
    %v603 = vmul.f32 %v599, %v576
    %v604 = vmul.f32 %v600, %v578
    %v605 = vadd.f32 %v601, %v602
    %v606 = vadd.f32 %v603, %v604
    %609 = vrot.lane.b32.xlu0 %v605, 64
    %v610 = vpop.permute.xlu0 %609
    %611 = vrot.lane.b32.xlu0 %v606, 64
    %v612 = vpop.permute.xlu0 %611
    %v615 = vadd.f32 %v605, %v610
    %v616 = vadd.f32 %v606, %v612
    %619 = vrot.lane.b32.xlu0 %v615, 96
    %v620 = vpop.permute.xlu0 %619
    %621 = vrot.lane.b32.xlu0 %v616, 96
    %v622 = vpop.permute.xlu0 %621
    %v625 = vadd.f32 %v615, %v620
    %v626 = vadd.f32 %v616, %v622
    %629 = vrot.lane.b32.xlu0 %v625, 112
    %v630 = vpop.permute.xlu0 %629
    %631 = vrot.lane.b32.xlu0 %v626, 112
    %v632 = vpop.permute.xlu0 %631
    %v635 = vadd.f32 %v625, %v630
    %v636 = vadd.f32 %v626, %v632
    %v637 = vld [vmem:[%s0 + $0x40] sm:$0xf]
    %v638 = vld [vmem:[%s0 + $0x48] sm:$0xff]
    %v639 = vld [vmem:[%s0 + $0x50] sm:$0xff]
    %v640 = vld [vmem:[%s0 + $0x58] sm:$0x1]
    %v641 = vlaneseq
    %v642 = vshrl.u32 %v641, 7
    %v643 = vsub.s32 0, %v642
    %v644 = vrot.slane %v640, %v643
    %645 = vmatprep.subr.mxu0 0.0
    %646 = vmatpush1.msra.mxu0 0.0
    %647 = vmatprep.subr.mxu0 0.0
    %648 = vmatpush1.msra.mxu0 0.0
    %649 = vmatprep.subr.mxu0 0.0
    %650 = vmatpush1.msra.mxu0 0.0
    %651 = vmatprep.subr.mxu0 0.0
    %652 = vmatpush1.msra.mxu0 0.0
    %653 = vmatprep.subr.mxu0 0.0
    %654 = vmatpush1.msra.mxu0 0.0
    %655 = vmatprep.subr.mxu0 0.0
    %656 = vmatpush1.msra.mxu0 0.0
    %657 = vmatprep.subr.mxu0 0.0
    %658 = vmatpush1.msra.mxu0 0.0
    %659 = vmatprep.subr.mxu0 0.0
    %660 = vmatpush1.msra.mxu0 0.0
    %661 = vmatprep.subr.mxu0 0.0
    %662 = vmatpush1.msra.mxu0 0.0
    %663 = vmatprep.subr.mxu0 0.0
    %664 = vmatpush1.msra.mxu0 0.0
    %665 = vmatprep.subr.mxu0 0.0
    %666 = vmatpush1.msra.mxu0 0.0
    %667 = vmatprep.subr.mxu0 0.0
    %668 = vmatpush1.msra.mxu0 0.0
    %669 = vmatprep.subr.mxu0 0.0
    %670 = vmatpush1.msra.mxu0 0.0
    %671 = vmatprep.subr.mxu0 0.0
    %672 = vmatpush1.msra.mxu0 0.0
    %673 = vmatprep.subr.mxu0 0.0
    %674 = vmatpush1.msra.mxu0 %v639
    %675 = vmatprep.subr.mxu0 0.0
    %676 = vmatpush1.msra.mxu0 %v638
    %677 = vmatprep.subr.mxu0 0.0
    %678 = vmatpush2.msra.mxu0 0.0
    %679 = vmatprep.subr.mxu0 0.0
    %680 = vmatpush2.msra.mxu0 0.0
    %681 = vmatprep.subr.mxu0 0.0
    %682 = vmatpush2.msra.mxu0 0.0
    %683 = vmatprep.subr.mxu0 0.0
    %684 = vmatpush2.msra.mxu0 0.0
    %685 = vmatprep.subr.mxu0 0.0
    %686 = vmatpush2.msra.mxu0 0.0
    %687 = vmatprep.subr.mxu0 0.0
    %688 = vmatpush2.msra.mxu0 0.0
    %689 = vmatprep.subr.mxu0 0.0
    %690 = vmatpush2.msra.mxu0 0.0
    %691 = vmatprep.subr.mxu0 0.0
    %692 = vmatpush2.msra.mxu0 0.0
    %693 = vmatprep.subr.mxu0 0.0
    %694 = vmatpush2.msra.mxu0 0.0
    %695 = vmatprep.subr.mxu0 0.0
    %696 = vmatpush2.msra.mxu0 0.0
    %697 = vmatprep.subr.mxu0 0.0
    %698 = vmatpush2.msra.mxu0 0.0
    %699 = vmatprep.subr.mxu0 0.0
    %700 = vmatpush2.msra.mxu0 0.0
    %701 = vmatprep.subr.mxu0 0.0
    %702 = vmatpush2.msra.mxu0 0.0
    %703 = vmatprep.subr.mxu0 0.0
    %704 = vmatpush2.msra.mxu0 0.0
    %705 = vmatprep.subr.mxu0 0.0
    %706 = vmatpush2.msra.mxu0 0.0
    %707 = vmatprep.subr.mxu0 0.0
    %708 = vmatpush2.msra.mxu0 0.0
    %709 = vmatprep.mubr.f32.mxu0 0.0
    %710 = vmatmul.mubr.f32.gmra.mxu0 %v343
    %v711 = vpop.f32.mrf.mxu0
    %v712 = vadd.f32 %v644, %v711
    %v713 = vpop.f32.mrf.mxu0
    %714 = vdwg.mxu0
    %v715 = vmax.f32 %v712, 0.0
    %vm716 = vcmask 80896
    %v718 = vsel %vm716, %v637, 0
    %vm720 = vcmask 1041408
    %v722 = vsel %vm720, %v636, 0
    %724 = vmatprep.subr.mxu0 0.0
    %725 = vmatpush1.msra.mxu0 0.0
    %726 = vmatprep.subr.mxu0 0.0
    %727 = vmatpush1.msra.mxu0 0.0
    %728 = vmatprep.subr.mxu0 0.0
    %729 = vmatpush1.msra.mxu0 0.0
    %730 = vmatprep.subr.mxu0 0.0
    %731 = vmatpush1.msra.mxu0 0.0
    %732 = vmatprep.subr.mxu0 0.0
    %733 = vmatpush1.msra.mxu0 0.0
    %734 = vmatprep.subr.mxu0 0.0
    %735 = vmatpush1.msra.mxu0 0.0
    %736 = vmatprep.subr.mxu0 0.0
    %737 = vmatpush1.msra.mxu0 0.0
    %738 = vmatprep.subr.mxu0 0.0
    %739 = vmatpush1.msra.mxu0 0.0
    %740 = vmatprep.subr.mxu0 0.0
    %741 = vmatpush1.msra.mxu0 0.0
    %742 = vmatprep.subr.mxu0 0.0
    %743 = vmatpush1.msra.mxu0 0.0
    %744 = vmatprep.subr.mxu0 0.0
    %745 = vmatpush1.msra.mxu0 0.0
    %746 = vmatprep.subr.mxu0 0.0
    %747 = vmatpush1.msra.mxu0 0.0
    %748 = vmatprep.subr.mxu0 0.0
    %749 = vmatpush1.msra.mxu0 0.0
    %750 = vmatprep.subr.mxu0 0.0
    %751 = vmatpush1.msra.mxu0 0.0
    %752 = vmatprep.subr.mxu0 0.0
    %753 = vmatpush1.msra.mxu0 %v722
    %754 = vmatprep.subr.mxu0 0.0
    %755 = vmatpush1.msra.mxu0 %v635
    %756 = vmatprep.subr.mxu0 0.0
    %757 = vmatpush2.msra.mxu0 0.0
    %758 = vmatprep.subr.mxu0 0.0
    %759 = vmatpush2.msra.mxu0 0.0
    %760 = vmatprep.subr.mxu0 0.0
    %761 = vmatpush2.msra.mxu0 0.0
    %762 = vmatprep.subr.mxu0 0.0
    %763 = vmatpush2.msra.mxu0 0.0
    %764 = vmatprep.subr.mxu0 0.0
    %765 = vmatpush2.msra.mxu0 0.0
    %766 = vmatprep.subr.mxu0 0.0
    %767 = vmatpush2.msra.mxu0 0.0
    %768 = vmatprep.subr.mxu0 0.0
    %769 = vmatpush2.msra.mxu0 0.0
    %770 = vmatprep.subr.mxu0 0.0
    %771 = vmatpush2.msra.mxu0 0.0
    %772 = vmatprep.subr.mxu0 0.0
    %773 = vmatpush2.msra.mxu0 0.0
    %774 = vmatprep.subr.mxu0 0.0
    %775 = vmatpush2.msra.mxu0 0.0
    %776 = vmatprep.subr.mxu0 0.0
    %777 = vmatpush2.msra.mxu0 0.0
    %778 = vmatprep.subr.mxu0 0.0
    %779 = vmatpush2.msra.mxu0 0.0
    %780 = vmatprep.subr.mxu0 0.0
    %781 = vmatpush2.msra.mxu0 0.0
    %782 = vmatprep.subr.mxu0 0.0
    %783 = vmatpush2.msra.mxu0 0.0
    %784 = vmatprep.subr.mxu0 0.0
    %785 = vmatpush2.msra.mxu0 0.0
    %786 = vmatprep.subr.mxu0 0.0
    %787 = vmatpush2.msra.mxu0 0.0
    %788 = vmatprep.mubr.f32.mxu0 0.0
    %789 = vmatmul.mubr.f32.gmra.mxu0 %v718
    %v790 = vpop.f32.mrf.mxu0
    %v791 = vadd.f32 %v715, %v790
    %v792 = vpop.f32.mrf.mxu0
    %793 = vdwg.mxu0
    %v794 = vld [vmem:[%s0 + $0x68] sm:$0xff]
    %v795 = vld [vmem:[%s0 + $0x70] sm:$0xff]
    %v796 = vld [vmem:[%s0 + $0x78] sm:$0x1]
    %v797 = vlaneseq
    %v798 = vshrl.u32 %v797, 7
    %v799 = vsub.s32 0, %v798
    %v800 = vrot.slane %v796, %v799
    %v802 = vsel %vm341, %v791, 0
    %804 = vmatprep.subr.mxu0 0.0
    %805 = vmatpush1.msra.mxu0 0.0
    %806 = vmatprep.subr.mxu0 0.0
    %807 = vmatpush1.msra.mxu0 0.0
    %808 = vmatprep.subr.mxu0 0.0
    %809 = vmatpush1.msra.mxu0 0.0
    %810 = vmatprep.subr.mxu0 0.0
    %811 = vmatpush1.msra.mxu0 0.0
    %812 = vmatprep.subr.mxu0 0.0
    %813 = vmatpush1.msra.mxu0 0.0
    %814 = vmatprep.subr.mxu0 0.0
    %815 = vmatpush1.msra.mxu0 0.0
    %816 = vmatprep.subr.mxu0 0.0
    %817 = vmatpush1.msra.mxu0 0.0
    %818 = vmatprep.subr.mxu0 0.0
    %819 = vmatpush1.msra.mxu0 0.0
    %820 = vmatprep.subr.mxu0 0.0
    %821 = vmatpush1.msra.mxu0 0.0
    %822 = vmatprep.subr.mxu0 0.0
    %823 = vmatpush1.msra.mxu0 0.0
    %824 = vmatprep.subr.mxu0 0.0
    %825 = vmatpush1.msra.mxu0 0.0
    %826 = vmatprep.subr.mxu0 0.0
    %827 = vmatpush1.msra.mxu0 0.0
    %828 = vmatprep.subr.mxu0 0.0
    %829 = vmatpush1.msra.mxu0 0.0
    %830 = vmatprep.subr.mxu0 0.0
    %831 = vmatpush1.msra.mxu0 0.0
    %832 = vmatprep.subr.mxu0 0.0
    %833 = vmatpush1.msra.mxu0 %v795
    %834 = vmatprep.subr.mxu0 0.0
    %835 = vmatpush1.msra.mxu0 %v794
    %836 = vmatprep.subr.mxu0 0.0
    %837 = vmatpush2.msra.mxu0 0.0
    %838 = vmatprep.subr.mxu0 0.0
    %839 = vmatpush2.msra.mxu0 0.0
    %840 = vmatprep.subr.mxu0 0.0
    %841 = vmatpush2.msra.mxu0 0.0
    %842 = vmatprep.subr.mxu0 0.0
    %843 = vmatpush2.msra.mxu0 0.0
    %844 = vmatprep.subr.mxu0 0.0
    %845 = vmatpush2.msra.mxu0 0.0
    %846 = vmatprep.subr.mxu0 0.0
    %847 = vmatpush2.msra.mxu0 0.0
    %848 = vmatprep.subr.mxu0 0.0
    %849 = vmatpush2.msra.mxu0 0.0
    %850 = vmatprep.subr.mxu0 0.0
    %851 = vmatpush2.msra.mxu0 0.0
    %852 = vmatprep.subr.mxu0 0.0
    %853 = vmatpush2.msra.mxu0 0.0
    %854 = vmatprep.subr.mxu0 0.0
    %855 = vmatpush2.msra.mxu0 0.0
    %856 = vmatprep.subr.mxu0 0.0
    %857 = vmatpush2.msra.mxu0 0.0
    %858 = vmatprep.subr.mxu0 0.0
    %859 = vmatpush2.msra.mxu0 0.0
    %860 = vmatprep.subr.mxu0 0.0
    %861 = vmatpush2.msra.mxu0 0.0
    %862 = vmatprep.subr.mxu0 0.0
    %863 = vmatpush2.msra.mxu0 0.0
    %864 = vmatprep.subr.mxu0 0.0
    %865 = vmatpush2.msra.mxu0 0.0
    %866 = vmatprep.subr.mxu0 0.0
    %867 = vmatpush2.msra.mxu0 0.0
    %868 = vmatprep.mubr.f32.mxu0 0.0
    %869 = vmatmul.mubr.f32.gmra.mxu0 %v802
    %v870 = vpop.f32.mrf.mxu0
    %v871 = vadd.f32 %v800, %v870
    %v872 = vpop.f32.mrf.mxu0
    %873 = vdwg.mxu0
    %vm874 = vcmask 27648
    %875 = vst.msk [vmem:[#allocation2] sm:$0xf] %vm874, %v871
    // Predicated region
    $region10: #{forward.1} parent=1 // pred_check
      _
    $region11: #{forward.1} parent=1 // pred_check_branch
      %877 = sbr.rel (0) target = $region13
    $region12: #{forward.1} parent=1 // pred_region
      %s879 = ssub.s32 64, 64
      %880 = vsyncadd [#allocation3], %s879
      %s882 = sshll.u32 [#allocation2], 4
      %s883 = int_to_ptr.vmem [resolvable:$true] %s882
      %885 = dma.vmem_to_hbm [thread:$0]  %s883, 64, %s2, [#allocation3]
    $region13: #{forward.1} parent=1 // pred_fallthru
      _
    // Predicated region
    $region14: #{forward.1} parent=1 // pred_check
      _
    $region15: #{forward.1} parent=1 // pred_check_branch
      %887 = sbr.rel (0) target = $region17
    $region16: #{forward.1} parent=1 // pred_region
      %888 = dma.done [#allocation3], 64
    $region17: #{forward.1} parent=1 // pred_fallthru
      _
    %889 = vsyncpa [#allocation3], 1

</llo_original>
